<compile_context>
chip_gen: v5e
topology: v5e:2x2
jax: 0.10.0
libtpu: 0.0.40
codegen_flags: <defaults>
</compile_context>

<pallas_src>
import jax
import jax.numpy as jnp
from jax.experimental import pallas as pl
from jax.experimental.pallas import tpu as pltpu


# --------------------------------------------------------------------------
# Kernel: one (TH x TW) output tile of one image per grid step.
# --------------------------------------------------------------------------
def conv3x3_prelu_kernel(x_ref, w_ref, ba_ref, o_ref):
    # x_ref : (1, TH+2, (TW+2)*Cin)  pre-padded, pre-haloed input band
    # w_ref : (3, (TW+2)*Cin, TW*Cout) Toeplitz-expanded weights (one per dy)
    # ba_ref: (2, TW*Cout)           row 0 = bias (tiled), row 1 = PReLU slope
    # o_ref : (1, TH, TW*Cout)       lane-dense output band
    th = o_ref.shape[1]

    bias = ba_ref[0:1, :].astype(jnp.float32)
    alpha = ba_ref[1:2, :].astype(jnp.float32)

    # Three MXU contractions (one per kernel row dy); dx taps, input channels
    # and the TW output columns are folded into K/N so the result is already
    # lane-dense.  f32 accumulation, bias used as the accumulator init.
    acc = bias + jnp.dot(x_ref[0, 0:th, :], w_ref[0],
                         preferred_element_type=jnp.float32)
    acc = acc + jnp.dot(x_ref[0, 1:th + 1, :], w_ref[1],
                        preferred_element_type=jnp.float32)
    acc = acc + jnp.dot(x_ref[0, 2:th + 2, :], w_ref[2],
                        preferred_element_type=jnp.float32)

    # PReLU (per-output-channel slope, tiled across the TW columns).
    o_ref[0] = jnp.where(acc > 0, acc, alpha * acc).astype(o_ref.dtype)


# --------------------------------------------------------------------------
# Host-side helpers.
# --------------------------------------------------------------------------
def _rup(x, m):
    return ((x + m - 1) // m) * m


def _toeplitz_weight(weight, tw):
    """(Cout, Cin, 3, 3) OIHW -> (3, (TW+2)*Cin, TW*Cout).

    wbig[dy, (tw_+dx)*Cin + ci, tw_*Cout + co] = weight[co, ci, dy, dx]
    """
    taps = jnp.transpose(weight, (2, 3, 1, 0))      # (3, 3, Cin, Cout)
    per_dy = []
    for dy in range(3):
        m = sum(jnp.kron(jnp.eye(tw + 2, tw, k=-dx, dtype=weight.dtype),
                         taps[dy, dx])
                for dx in range(3))
        per_dy.append(m)
    return jnp.stack(per_dy, axis=0)


def _pick_band_cols(W, Cout, lane_multiple=128):
    """Smallest divisor TW of W with TW*Cout a multiple of `lane_multiple`
    (lane-dense output, minimal Toeplitz zero-MAC amplification and a small,
    VMEM-resident weight).  Falls back to the smallest divisor reaching
    lane_multiple lanes, else the full W."""
    divs = [d for d in range(1, W + 1) if W % d == 0]
    exact = [d for d in divs if (d * Cout) % lane_multiple == 0]
    if exact:
        return min(exact)
    big = [d for d in divs if d * Cout >= lane_multiple]
    return min(big) if big else W


def _pick_band_rows(N, H, TW, WB, Cin, Cout, in_item, out_item,
                    budget_bytes, row_align):
    """Largest TH (multiple of row_align dividing H, or H itself) whose
    double-buffered working set — input band, output band, Toeplitz weight,
    bias/slope — fits budget_bytes.  The '>=2 bands' preference is only
    enforced when batch and W-tiles give no grid parallelism (N==1, WB==1)."""
    kp, nout = (TW + 2) * Cin, TW * Cout

    def fits(t):
        working = (2 * (t + 2) * kp * in_item        # input band (dbl buffered)
                   + 2 * t * nout * out_item         # output band
                   + 2 * 3 * kp * nout * in_item     # Toeplitz weight
                   + 2 * 2 * nout * 4)               # bias / PReLU slope (f32)
        return working <= budget_bytes

    cands = sorted({t for t in range(row_align, H + 1, row_align)
                    if H % t == 0} | {H})
    fitting = [t for t in cands if fits(t)] or [cands[0]]
    if N == 1 and WB == 1:
        multi = [t for t in fitting if H // t >= 2]
        if multi:
            return max(multi)
    return max(fitting)


# --------------------------------------------------------------------------
# Wrapper.
# --------------------------------------------------------------------------
def conv3x3_prelu(x_nchw, weight, bias, alpha, *, band_rows=None,
                  band_cols=None, compute_dtype=jnp.bfloat16,
                  vmem_budget_bytes=24 << 20):
    """x_nchw: (N, Cin, H, W); weight: (Cout, Cin, 3, 3); bias, alpha: (Cout,)."""
    N, Cin, H, W = x_nchw.shape
    Cout = weight.shape[0]
    assert weight.shape == (Cout, Cin, 3, 3)

    out_dtype = x_nchw.dtype
    cdt = jnp.dtype(compute_dtype) if compute_dtype is not None else jnp.dtype(out_dtype)
    in_item = cdt.itemsize
    out_item = jnp.dtype(out_dtype).itemsize
    row_align = 16 if in_item < 4 else 8          # bf16 sublane packing

    TW = band_cols if band_cols is not None else _pick_band_cols(W, Cout)
    assert W % TW == 0
    WB = W // TW
    TH = band_rows if band_rows is not None else _pick_band_rows(
        N, H, TW, WB, Cin, Cout, in_item, out_item, vmem_budget_bytes, row_align)
    assert H % TH == 0
    HB = H // TH
    KP, NOUT = (TW + 2) * Cin, TW * Cout
    NB = N * HB * WB

    # Layout pass (fuses with the required NCHW->NHWC transpose): channels
    # last, zero halo baked in, overlapping (TH+2, TW+2) windows gathered so
    # the kernel needs no scratch / zero-fill / halo masking and reads each
    # input pixel once (+2 halo rows / cols per tile).
    x = jnp.transpose(x_nchw, (0, 2, 3, 1)).astype(cdt)        # NHWC
    xpad = jnp.pad(x, ((0, 0), (1, 1), (1, 1), (0, 0)))        # (N, H+2, W+2, Cin)
    tiles = []
    for hb in range(HB):
        for wb in range(WB):
            tiles.append(xpad[:, hb * TH:hb * TH + TH + 2,
                              wb * TW:wb * TW + TW + 2, :])
    xb = jnp.stack(tiles, axis=1).reshape(NB, TH + 2, KP)

    wbig = _toeplitz_weight(weight, TW).astype(cdt)            # (3, KP, NOUT)
    # bias + PReLU slope merged into a single tiny resident operand (f32).
    ba = jnp.stack([jnp.tile(bias, TW), jnp.tile(alpha, TW)]
                   ).astype(jnp.float32)                       # (2, NOUT)

    # VMEM accounting (padded to (8,128) tiles) -> vmem_limit_bytes that is
    # generous on v5e/v6e yet stays within v7x's 64 MiB per-core VMEM.
    footprint = (2 * _rup(TH + 2, 8) * _rup(KP, 128) * in_item
                 + 2 * _rup(TH, 8) * _rup(NOUT, 128) * out_item
                 + 2 * 3 * _rup(KP, 8) * _rup(NOUT, 128) * in_item
                 + 2 * 2 * 8 * _rup(NOUT, 128) * 4)
    vmem_limit = int(min(64 << 20, max(32 << 20, 2 * footprint)))

    # Cost hint: MACs actually issued on the MXU (incl. Toeplitz structural
    # zeros) and bytes including the halo-duplicated band layout.
    ce = pl.CostEstimate(
        flops=2 * NB * 3 * TH * KP * NOUT,
        transcendentals=0,
        bytes_accessed=(xb.size * xb.dtype.itemsize
                        + wbig.size * wbig.dtype.itemsize
                        + ba.size * ba.dtype.itemsize
                        + NB * TH * NOUT * out_item))

    out_flat = pl.pallas_call(
        conv3x3_prelu_kernel,
        out_shape=jax.ShapeDtypeStruct((NB, TH, NOUT), out_dtype),
        grid_spec=pltpu.PrefetchScalarGridSpec(
            num_scalar_prefetch=0,
            grid=(NB,),
            in_specs=[
                # one haloed band per grid step
                pl.BlockSpec((1, TH + 2, KP), lambda i: (i, 0, 0)),
                # constants: same block every step -> DMA'd only once.
                # (Kept at the default buffering for lowering safety; their
                #  VMEM cost is negligible next to the band buffers.)
                pl.BlockSpec((3, KP, NOUT), lambda i: (0, 0, 0)),
                pl.BlockSpec((2, NOUT), lambda i: (0, 0)),
            ],
            out_specs=pl.BlockSpec((1, TH, NOUT), lambda i: (i, 0, 0)),
        ),
        compiler_params=pltpu.CompilerParams(
            dimension_semantics=("parallel",),
            vmem_limit_bytes=vmem_limit),
        cost_estimate=ce,
    )(xb, wbig, ba)

    # (NB, TH, TW*Cout) -> (N, H, W, Cout) -> NCHW to match PyTorch.
    out = out_flat.reshape(N, HB, WB, TH, TW, Cout)
    out = jnp.transpose(out, (0, 1, 3, 2, 4, 5)).reshape(N, H, W, Cout)
    return jnp.transpose(out, (0, 3, 1, 2))


def _reference(x_nchw, weight, bias, alpha):
    """Plain-JAX reference (lax conv, highest precision) for correctness."""
    y = jax.lax.conv_general_dilated(
        x_nchw, weight, window_strides=(1, 1), padding=((1, 1), (1, 1)),
        dimension_numbers=("NCHW", "OIHW", "NCHW"),
        precision=jax.lax.Precision.HIGHEST)
    y = y + bias.reshape(1, -1, 1, 1)
    return jnp.where(y > 0, y, alpha.reshape(1, -1, 1, 1) * y)


if __name__ == "__main__":
    # Module config: Conv3X3(inp_planes=4, out_planes=8, act_type='prelu')
    N, Cin, Cout, H, W = 2, 4, 8, 16, 16

    key = jax.random.PRNGKey(0)
    k_x, k_w, k_b = jax.random.split(key, 3)

    x = jax.random.normal(k_x, (N, Cin, H, W), dtype=jnp.float32)

    # Deterministic parameter init (PyTorch-style uniform bounds).
    fan_in = Cin * 3 * 3
    bound = 1.0 / (fan_in ** 0.5)
    weight = jax.random.uniform(k_w, (Cout, Cin, 3, 3), jnp.float32,
                                minval=-bound, maxval=bound)
    bias = jax.random.uniform(k_b, (Cout,), jnp.float32,
                              minval=-bound, maxval=bound)
    alpha = jnp.full((Cout,), 0.25, dtype=jnp.float32)   # nn.PReLU default

    ref = jax.block_until_ready(_reference(x, weight, bias, alpha))

    # 1) f32 MXU operands — near-exact check.
    out_f32 = jax.block_until_ready(
        conv3x3_prelu(x, weight, bias, alpha, compute_dtype=jnp.float32))
    assert out_f32.shape == (N, Cout, H, W)
    assert jnp.allclose(out_f32, ref, atol=1e-2, rtol=1e-2)

    # 2) default path: bf16 MXU operands, f32 accumulation — loose check.
    out_bf16 = jax.block_until_ready(conv3x3_prelu(x, weight, bias, alpha))
    assert out_bf16.shape == (N, Cout, H, W)
    assert jnp.allclose(out_bf16, ref, atol=1e-1, rtol=1e-1)

    # 3) exercise the H-band / W-tile path explicitly (HB=2, WB=2).
    out_tiled = jax.block_until_ready(
        conv3x3_prelu(x, weight, bias, alpha, compute_dtype=jnp.float32,
                      band_rows=8, band_cols=8))
    assert jnp.allclose(out_tiled, ref, atol=1e-2, rtol=1e-2)

    print("KERNEL_OK")
</pallas_src>

<mosaic_0001>
module attributes {stable_mosaic.version = 11 : i64} {
  func.func @conv3x3_prelu_kernel(%arg0: i32, %arg1: memref<1x18x72xf32, #tpu.memory_space<vmem>>, %arg2: memref<3x72x128xf32, #tpu.memory_space<vmem>>, %arg3: memref<2x128xf32, #tpu.memory_space<vmem>>, %arg4: memref<1x16x128xf32, #tpu.memory_space<vmem>>) attributes {dimension_semantics = [#tpu.dimension_semantics<parallel>], iteration_bounds = array<i64: 2>, scalar_prefetch = 0 : i64, scratch_operands = 0 : i64, tpu.core_type = #tpu.core_type<tc>, window_params = [{transform_indices = @transform_0, window_bounds = array<i64: 1, 18, 72>}, {pipeline_mode = #tpu.pipeline_mode<synchronous>, transform_indices = @transform_1, window_bounds = array<i64: 3, 72, 128>}, {pipeline_mode = #tpu.pipeline_mode<synchronous>, transform_indices = @transform_2, window_bounds = array<i64: 2, 128>}, {transform_indices = @transform_3, window_bounds = array<i64: 1, 16, 128>}]} {
    %c0 = arith.constant 0 : index
    %c0_0 = arith.constant 0 : index
    %0 = vector.load %arg3[%c0, %c0_0] : memref<2x128xf32, #tpu.memory_space<vmem>>, vector<1x128xf32>
    %c1 = arith.constant 1 : index
    %c0_1 = arith.constant 0 : index
    %1 = vector.load %arg3[%c1, %c0_1] : memref<2x128xf32, #tpu.memory_space<vmem>>, vector<1x128xf32>
    %c0_2 = arith.constant 0 : index
    %c0_3 = arith.constant 0 : index
    %c0_4 = arith.constant 0 : index
    %2 = vector.load %arg1[%c0_2, %c0_3, %c0_4] : memref<1x18x72xf32, #tpu.memory_space<vmem>>, vector<1x16x72xf32>
    %3 = vector.shape_cast %2 : vector<1x16x72xf32> to vector<16x72xf32>
    %c0_5 = arith.constant 0 : index
    %c0_6 = arith.constant 0 : index
    %c0_7 = arith.constant 0 : index
    %4 = vector.load %arg2[%c0_5, %c0_6, %c0_7] : memref<3x72x128xf32, #tpu.memory_space<vmem>>, vector<1x72x128xf32>
    %5 = vector.shape_cast %4 : vector<1x72x128xf32> to vector<72x128xf32>
    %cst = arith.constant dense<0.000000e+00> : vector<16x128xf32>
    %6 = tpu.matmul %3, %5, %cst {dimension_numbers = #tpu.dot_dimension_numbers<[1], [0], [0], [1], [0, 0, 1, 1], [], []>} : vector<16x72xf32>, vector<72x128xf32>, vector<16x128xf32> -> vector<16x128xf32>
    %7 = vector.broadcast %0 : vector<1x128xf32> to vector<16x128xf32>
    %8 = arith.addf %7, %6 : vector<16x128xf32>
    %c0_8 = arith.constant 0 : index
    %c1_9 = arith.constant 1 : index
    %c0_10 = arith.constant 0 : index
    %9 = vector.load %arg1[%c0_8, %c1_9, %c0_10] : memref<1x18x72xf32, #tpu.memory_space<vmem>>, vector<1x16x72xf32>
    %10 = vector.shape_cast %9 : vector<1x16x72xf32> to vector<16x72xf32>
    %c1_11 = arith.constant 1 : index
    %c0_12 = arith.constant 0 : index
    %c0_13 = arith.constant 0 : index
    %11 = vector.load %arg2[%c1_11, %c0_12, %c0_13] : memref<3x72x128xf32, #tpu.memory_space<vmem>>, vector<1x72x128xf32>
    %12 = vector.shape_cast %11 : vector<1x72x128xf32> to vector<72x128xf32>
    %cst_14 = arith.constant dense<0.000000e+00> : vector<16x128xf32>
    %13 = tpu.matmul %10, %12, %cst_14 {dimension_numbers = #tpu.dot_dimension_numbers<[1], [0], [0], [1], [0, 0, 1, 1], [], []>} : vector<16x72xf32>, vector<72x128xf32>, vector<16x128xf32> -> vector<16x128xf32>
    %14 = arith.addf %8, %13 : vector<16x128xf32>
    %c0_15 = arith.constant 0 : index
    %c2 = arith.constant 2 : index
    %c0_16 = arith.constant 0 : index
    %15 = vector.load %arg1[%c0_15, %c2, %c0_16] : memref<1x18x72xf32, #tpu.memory_space<vmem>>, vector<1x16x72xf32>
    %16 = vector.shape_cast %15 : vector<1x16x72xf32> to vector<16x72xf32>
    %c2_17 = arith.constant 2 : index
    %c0_18 = arith.constant 0 : index
    %c0_19 = arith.constant 0 : index
    %17 = vector.load %arg2[%c2_17, %c0_18, %c0_19] : memref<3x72x128xf32, #tpu.memory_space<vmem>>, vector<1x72x128xf32>
    %18 = vector.shape_cast %17 : vector<1x72x128xf32> to vector<72x128xf32>
    %cst_20 = arith.constant dense<0.000000e+00> : vector<16x128xf32>
    %19 = tpu.matmul %16, %18, %cst_20 {dimension_numbers = #tpu.dot_dimension_numbers<[1], [0], [0], [1], [0, 0, 1, 1], [], []>} : vector<16x72xf32>, vector<72x128xf32>, vector<16x128xf32> -> vector<16x128xf32>
    %20 = arith.addf %14, %19 : vector<16x128xf32>
    %cst_21 = arith.constant 0.000000e+00 : f32
    %21 = vector.broadcast %cst_21 : f32 to vector<16x128xf32>
    %22 = arith.cmpf ogt, %20, %21 : vector<16x128xf32>
    %23 = vector.broadcast %1 : vector<1x128xf32> to vector<16x128xf32>
    %24 = arith.mulf %23, %20 : vector<16x128xf32>
    %25 = arith.select %22, %20, %24 : vector<16x128xi1>, vector<16x128xf32>
    %c0_22 = arith.constant 0 : index
    %c0_23 = arith.constant 0 : index
    %c0_24 = arith.constant 0 : index
    %26 = vector.load %arg4[%c0_22, %c0_23, %c0_24] : memref<1x16x128xf32, #tpu.memory_space<vmem>>, vector<1x16x128xf32>
    %27 = vector.shape_cast %26 : vector<1x16x128xf32> to vector<16x128xf32>
    %28 = vector.shape_cast %25 : vector<16x128xf32> to vector<1x16x128xf32>
    tpu.vector_store %arg4[%c0_22, %c0_23, %c0_24], %28 {strides = array<i32>} : memref<1x16x128xf32, #tpu.memory_space<vmem>>, vector<1x16x128xf32>,
    return
  }
  func.func @transform_0(%arg0: i32) -> (i32, i32, i32) {
    %c0_i32 = arith.constant 0 : i32
    %c0_i32_0 = arith.constant 0 : i32
    %c0_i32_1 = arith.constant 0 : i32
    return %arg0, %c0_i32, %c0_i32_0 : i32, i32, i32
  }
  func.func @transform_1(%arg0: i32) -> (i32, i32, i32) {
    %c0_i32 = arith.constant 0 : i32
    %c0_i32_0 = arith.constant 0 : i32
    %c0_i32_1 = arith.constant 0 : i32
    %c0_i32_2 = arith.constant 0 : i32
    return %c0_i32, %c0_i32_0, %c0_i32_1 : i32, i32, i32
  }
  func.func @transform_2(%arg0: i32) -> (i32, i32) {
    %c0_i32 = arith.constant 0 : i32
    %c0_i32_0 = arith.constant 0 : i32
    %c0_i32_1 = arith.constant 0 : i32
    return %c0_i32, %c0_i32_0 : i32, i32
  }
  func.func @transform_3(%arg0: i32) -> (i32, i32, i32) {
    %c0_i32 = arith.constant 0 : i32
    %c0_i32_0 = arith.constant 0 : i32
    %c0_i32_1 = arith.constant 0 : i32
    return %arg0, %c0_i32, %c0_i32_0 : i32, i32, i32
  }
}

</mosaic_0001>

<llo_original>
// kernel: tpu_custom_call.1
$region0: #{tpu_custom_call.1}
  #allocation0 [shape = 'u32[]', space=smem, size = 0x4, offset = 0x4, fixed_abs, tag = 'smem constant byte address 0x4 - core index']
  #allocation1 [shape = 'u32[72,128]{1,0:T(1,128)}', space=vmem, size = 0x9000, scoped, tag = 'internal scratch']
  %s0 = inlined_call_operand.vmem [shape: f32[2,18,72], index: 0, kind: input, shape index: {}]
  %s1 = inlined_call_operand.hbm [shape: f32[3,72,128], index: 1, kind: input, shape index: {}]
  %s2 = inlined_call_operand.vmem [shape: f32[2,128], index: 2, kind: input, shape index: {}]
  %s3 = inlined_call_operand.hbm [shape: f32[2,16,128], index: 3, kind: output, shape index: {}]
  %s4 = sld [smem:[#allocation0]]
  $region49: #{tpu_custom_call.1} parent=0
    _
  %s6 = ssub.s32 1, %s4
  %s7 = scalar_select 0, %s6, %s4
  $region1: #{tpu_custom_call.1} parent=0
    #allocation2 [shape = 'u8[110592]{0}', space=vmem, size = 0x1b000, scoped, tag = 'input window, operand 1, single buffered']
    #allocation3 [shape = 's32[2]{0}', space=sflag, size = 0x8, scoped, tag = 'scoped memory for tpu_custom_call.1']
    #allocation4 [shape = 's32[2]{0}', space=sflag, size = 0x8, scoped, tag = 'scoped memory for tpu_custom_call.1']
    #allocation5 [shape = 'u8[16384]{0}', space=vmem, size = 0x4000, scoped, tag = 'output window, operand 0']
    %8 = vsyncpa [#allocation3], 0
    %9 = vsyncpa [#allocation4], 0
    %s10 = scalar_lea.sflag [#allocation4], 1
    %11 = vsyncpa %s10, 0
    loop: start=0, step=1, limit=4
    $region2: #{tpu_custom_call.1} parent=1 // loop_pre_header
      _
    $region3: #{tpu_custom_call.1} parent=1 // loop_header
      %s13 = sphi 0, %s17
      %p14 = scmp.ge.s32.totalorder %s13, 4
      %s23 = sphi 0, %s25
      %s26 = sphi 0, %s23
      %s27 = sphi 0, %s26
      %s43 = sphi 0, %s27
      %s47 = sphi 0, %s47
      %s49 = sphi 0, %s47
      %s50 = sphi 0, %s49
      %s64 = sphi 0, %s50
      %s68 = sphi 0, %s68
      %s70 = sphi 0, %s68
      %s71 = sphi 0, %s70
      %s85 = sphi 0, %s71
      %s91 = sphi 0, %s93
      %s94 = sphi 0, %s91
      %s95 = sphi 0, %s94
      %s111 = sphi 0, %s95
    $region4: #{tpu_custom_call.1} parent=1 // loop_header_branch
      %16 = sbr.rel (%p14) target = $region8
    $region5: #{tpu_custom_call.1} parent=1 // loop_body
      %s18 = ssub.s32 %s13, 1
      %s19 = ssub.s32 %s13, 2
      %s20 = sadd.s32 %s13, 1
      %s21 = ssub.s32 %s13, %s20
      %p22 = scmp.eq.s32.totalorder %s21, 0
      %s24 = sadd.s32 %s23, 1
      %s25 = scalar_select %p22, %s23, %s24
      %p28 = pneg %p22
      %p29 = scmp.eq.s32.totalorder %s13, 1
      %p30 = por %p28, %p29
      %p31 = scmp.ne.s32.totalorder %s23, %s26
      %p32 = scmp.eq.s32.totalorder %s13, 0
      %p33 = por %p31, %p32
      %p34 = scmp.ne.s32.totalorder %s23, %s26
      %p35 = scmp.eq.s32.totalorder %s18, 1
      %p36 = por %p34, %p35
      %p37 = scmp.ne.s32.totalorder %s26, %s27
      %p38 = scmp.eq.s32.totalorder %s18, 0
      %p39 = por %p37, %p38
      %p40 = scmp.ne.s32.totalorder %s26, %s27
      %p41 = scmp.eq.s32.totalorder %s19, 1
      %p42 = por %p40, %p41
      %p44 = scmp.ne.s32.totalorder %s27, %s43
      %p45 = scmp.eq.s32.totalorder %s19, 0
      %p46 = por %p44, %p45
      %s48 = sadd.s32 %s47, 1
      %p51 = scmp.eq.s32.totalorder %s13, 1
      %p52 = scmp.ne.s32.totalorder %s47, %s49
      %p53 = scmp.eq.s32.totalorder %s13, 0
      %p54 = por %p52, %p53
      %p55 = scmp.ne.s32.totalorder %s47, %s49
      %p56 = scmp.eq.s32.totalorder %s18, 1
      %p57 = por %p55, %p56
      %p58 = scmp.ne.s32.totalorder %s49, %s50
      %p59 = scmp.eq.s32.totalorder %s18, 0
      %p60 = por %p58, %p59
      %p61 = scmp.ne.s32.totalorder %s49, %s50
      %p62 = scmp.eq.s32.totalorder %s19, 1
      %p63 = por %p61, %p62
      %p65 = scmp.ne.s32.totalorder %s50, %s64
      %p66 = scmp.eq.s32.totalorder %s19, 0
      %p67 = por %p65, %p66
      %s69 = sadd.s32 %s68, 1
      %p72 = scmp.eq.s32.totalorder %s13, 1
      %p73 = scmp.ne.s32.totalorder %s68, %s70
      %p74 = scmp.eq.s32.totalorder %s13, 0
      %p75 = por %p73, %p74
      %p76 = scmp.ne.s32.totalorder %s68, %s70
      %p77 = scmp.eq.s32.totalorder %s18, 1
      %p78 = por %p76, %p77
      %p79 = scmp.ne.s32.totalorder %s70, %s71
      %p80 = scmp.eq.s32.totalorder %s18, 0
      %p81 = por %p79, %p80
      %p82 = scmp.ne.s32.totalorder %s70, %s71
      %p83 = scmp.eq.s32.totalorder %s19, 1
      %p84 = por %p82, %p83
      %p86 = scmp.ne.s32.totalorder %s71, %s85
      %p87 = scmp.eq.s32.totalorder %s19, 0
      %p88 = por %p86, %p87
      %s89 = ssub.s32 %s13, %s20
      %p90 = scmp.eq.s32.totalorder %s89, 0
      %s92 = sadd.s32 %s91, 1
      %s93 = scalar_select %p90, %s91, %s92
      %p96 = pneg %p90
      %p97 = scmp.eq.s32.totalorder %s13, 1
      %p98 = por %p96, %p97
      %p99 = scmp.ne.s32.totalorder %s91, %s94
      %p100 = scmp.eq.s32.totalorder %s13, 0
      %p101 = por %p99, %p100
      %p102 = scmp.ne.s32.totalorder %s91, %s94
      %p103 = scmp.eq.s32.totalorder %s18, 1
      %p104 = por %p102, %p103
      %p105 = scmp.ne.s32.totalorder %s94, %s95
      %p106 = scmp.eq.s32.totalorder %s18, 0
      %p107 = por %p105, %p106
      %p108 = scmp.ne.s32.totalorder %s94, %s95
      %p109 = scmp.eq.s32.totalorder %s19, 1
      %p110 = por %p108, %p109
      %p112 = scmp.ne.s32.totalorder %s95, %s111
      %p113 = scmp.eq.s32.totalorder %s19, 0
      %p114 = por %p112, %p113
      %p115 = scmp.le.s32.totalorder 1, %s13
      %p116 = scmp.lt.s32.totalorder %s13, 3
      %p117 = pnand %p115, %p116
      %p118 = pneg %p117
      // Predicated region
      $region9: #{tpu_custom_call.1} parent=5 // pred_check
        _
      $region10: #{tpu_custom_call.1} parent=5 // pred_check_branch
        %120 = sbr.rel (%p117) target = $region12
      $region11: #{tpu_custom_call.1} parent=5 // pred_region
        %s121 = ssub.s32 %s13, 1
        // Predicated region
        $region13: #{tpu_custom_call.1} parent=11 // pred_check
          %p122 = pneg %p60
        $region14: #{tpu_custom_call.1} parent=11 // pred_check_branch
          %124 = sbr.rel (%p122) target = $region16
        $region15: #{tpu_custom_call.1} parent=11 // pred_region
          %126 = vsyncadd [#allocation3], 0
          %s127 = sshll.u32 %s1, 4
          %s128 = int_to_ptr.hbm [resolvable:$true] %s127
          %s129 = sshll.u32 [#allocation2], 4
          %s130 = int_to_ptr.vmem [resolvable:$true] %s129
          %135 = dma.hbm_to_vmem [thread:$0]  %s128, 3456, %s130, [#allocation3], 128, 128, 8
        $region16: #{tpu_custom_call.1} parent=11 // pred_fallthru
          _
        // Predicated region
        $region17: #{tpu_custom_call.1} parent=11 // pred_check
          %p136 = pneg %p81
        $region18: #{tpu_custom_call.1} parent=11 // pred_check_branch
          %138 = sbr.rel (%p136) target = $region20
        $region19: #{tpu_custom_call.1} parent=11 // pred_region
          _
        $region20: #{tpu_custom_call.1} parent=11 // pred_fallthru
          _
      $region12: #{tpu_custom_call.1} parent=5 // pred_fallthru
        _
      %p139 = scmp.lt.s32.totalorder %s13, 2
      // Predicated region
      $region21: #{tpu_custom_call.1} parent=5 // pred_check
        %p140 = pneg %p139
      $region22: #{tpu_custom_call.1} parent=5 // pred_check_branch
        %142 = sbr.rel (%p140) target = $region24
      $region23: #{tpu_custom_call.1} parent=5 // pred_region
        // Predicated region
        $region25: #{tpu_custom_call.1} parent=23 // pred_check
          %p143 = pneg %p33
        $region26: #{tpu_custom_call.1} parent=23 // pred_check_branch
          %145 = sbr.rel (%p143) target = $region28
        $region27: #{tpu_custom_call.1} parent=23 // pred_region
          %p146 = scmp.lt.s32.totalorder %s13, 1
          %s147 = scalar_select %p146, %s13, 1
          %s148 = smul.addr %s147, 3
          %s149 = smul.addr %s148, 8
          %s150 = scalar_lea.vmem %s0, %s149
        $region28: #{tpu_custom_call.1} parent=23 // pred_fallthru
          _
      $region24: #{tpu_custom_call.1} parent=5 // pred_fallthru
        _
      %p151 = scmp.le.s32.totalorder 1, %s13
      %p152 = scmp.lt.s32.totalorder %s13, 3
      %p153 = pnand %p151, %p152
      %p154 = pneg %p153
      // Predicated region
      $region29: #{tpu_custom_call.1} parent=5 // pred_check
        _
      $region30: #{tpu_custom_call.1} parent=5 // pred_check_branch
        %156 = sbr.rel (%p153) target = $region32
      $region31: #{tpu_custom_call.1} parent=5 // pred_region
        %s157 = ssub.s32 %s13, 1
        // Predicated region
        $region33: #{tpu_custom_call.1} parent=31 // pred_check
          %p158 = pneg %p60
        $region34: #{tpu_custom_call.1} parent=31 // pred_check_branch
          %160 = sbr.rel (%p158) target = $region36
        $region35: #{tpu_custom_call.1} parent=31 // pred_region
          %162 = dma.done [#allocation3], 3456
        $region36: #{tpu_custom_call.1} parent=31 // pred_fallthru
          _
        %p163 = scmp.lt.s32.totalorder %s18, 1
        %s164 = scalar_select %p163, %s18, 1
        %s165 = smul.addr %s164, 3
        %s166 = smul.addr %s165, 8
        %s167 = scalar_lea.vmem %s0, %s166
        %p168 = pneg %p39
        %p169 = pneg %p36
        %p170 = pneg %p60
        %p171 = pneg %p57
        %p172 = pneg %p81
        %p173 = pneg %p78
        %p174 = pneg %p107
        %p175 = pneg %p104
        %s176 = sand.u32 %s94, 1
        %s177 = scalar_lea.sflag [#allocation4], %s176
        %s178 = sand.u32 %s94, 1
        %s179 = smul.addr %s178, 16
        %s180 = scalar_lea.vmem [#allocation5], %s179
        %p181 = scmp.lt.s32.totalorder %s18, 1
        %s182 = scalar_select %p181, %s18, 1
        %s183 = smul.addr %s182, 3
        %s184 = smul.addr %s183, 8
        %s185 = scalar_lea.vmem %s0, %s184
        %v186 = vld [vmem:[%s2] sm:$0x1]
        %v187 = vld [vmem:[%s2 + $0x1] sm:$0x1]
        %v188 = vld [vmem:[%s185] sm:$0xff]
        %v189 = vld [vmem:[%s185 + $0x8] sm:$0xff]
        %v190 = vld [vmem:[#allocation2] sm:$0xff]
        %v191 = vld [vmem:[#allocation2 + $0x8] sm:$0xff]
        %v192 = vld [vmem:[#allocation2 + $0x10] sm:$0xff]
        %v193 = vld [vmem:[#allocation2 + $0x18] sm:$0xff]
        %v194 = vld [vmem:[#allocation2 + $0x20] sm:$0xff]
        %v195 = vld [vmem:[#allocation2 + $0x28] sm:$0xff]
        %v196 = vld [vmem:[#allocation2 + $0x30] sm:$0xff]
        %v197 = vld [vmem:[#allocation2 + $0x38] sm:$0xff]
        %v198 = vld [vmem:[#allocation2 + $0x40] sm:$0xff]
        %vm199 = vcmask 588800
        %v201 = vsel %vm199, %v188, 0
        %v204 = vsel %vm199, %v189, 0
        %206 = vmatpush.msra.mxu0 0.0
        %207 = vmatpush.msra.mxu0 0.0
        %208 = vmatpush.msra.mxu0 0.0
        %209 = vmatpush.msra.mxu0 0.0
        %210 = vmatpush.msra.mxu0 0.0
        %211 = vmatpush.msra.mxu0 0.0
        %212 = vmatpush.msra.mxu0 0.0
        %213 = vmatpush.msra.mxu0 %v198
        %214 = vmatpush.msra.mxu0 %v197
        %215 = vmatpush.msra.mxu0 %v196
        %216 = vmatpush.msra.mxu0 %v195
        %217 = vmatpush.msra.mxu0 %v194
        %218 = vmatpush.msra.mxu0 %v193
        %219 = vmatpush.msra.mxu0 %v192
        %220 = vmatpush.msra.mxu0 %v191
        %221 = vmatpush.msra.mxu0 %v190
        %222 = vmatmul.f32.gmra.mxu0 %v201
        %v223 = vpop.f32.mrf.mxu0
        %v224 = vadd.f32 0.0, %v223
        %225 = vmatmul.f32.gmra.mxu0 %v204
        %v226 = vpop.f32.mrf.mxu0
        %v227 = vadd.f32 0.0, %v226
        %228 = vdwg.mxu0
        %v229 = vperm.slane %v186, 0
        %v230 = vadd.f32 %v229, %v224
        %v231 = vadd.f32 %v229, %v227
        %v232 = vld [vmem:[%s185 + $0x1] sm:$0xff]
        %v233 = vld [vmem:[%s185 + $0x9] sm:$0xff]
        %s234 = scalar_lea.vmem [#allocation2], 72
        %v235 = vld [vmem:[%s234] sm:$0xff]
        %v236 = vld [vmem:[%s234 + $0x8] sm:$0xff]
        %v237 = vld [vmem:[%s234 + $0x10] sm:$0xff]
        %v238 = vld [vmem:[%s234 + $0x18] sm:$0xff]
        %v239 = vld [vmem:[%s234 + $0x20] sm:$0xff]
        %v240 = vld [vmem:[%s234 + $0x28] sm:$0xff]
        %v241 = vld [vmem:[%s234 + $0x30] sm:$0xff]
        %v242 = vld [vmem:[%s234 + $0x38] sm:$0xff]
        %v243 = vld [vmem:[%s234 + $0x40] sm:$0xff]
        %v245 = vsel %vm199, %v232, 0
        %v248 = vsel %vm199, %v233, 0
        %250 = vmatpush.msra.mxu0 0.0
        %251 = vmatpush.msra.mxu0 0.0
        %252 = vmatpush.msra.mxu0 0.0
        %253 = vmatpush.msra.mxu0 0.0
        %254 = vmatpush.msra.mxu0 0.0
        %255 = vmatpush.msra.mxu0 0.0
        %256 = vmatpush.msra.mxu0 0.0
        %257 = vmatpush.msra.mxu0 %v243
        %258 = vmatpush.msra.mxu0 %v242
        %259 = vmatpush.msra.mxu0 %v241
        %260 = vmatpush.msra.mxu0 %v240
        %261 = vmatpush.msra.mxu0 %v239
        %262 = vmatpush.msra.mxu0 %v238
        %263 = vmatpush.msra.mxu0 %v237
        %264 = vmatpush.msra.mxu0 %v236
        %265 = vmatpush.msra.mxu0 %v235
        %266 = vmatmul.f32.gmra.mxu0 %v245
        %v267 = vpop.f32.mrf.mxu0
        %v268 = vadd.f32 0.0, %v267
        %269 = vmatmul.f32.gmra.mxu0 %v248
        %v270 = vpop.f32.mrf.mxu0
        %v271 = vadd.f32 0.0, %v270
        %272 = vdwg.mxu0
        %v273 = vadd.f32 %v230, %v268
        %v274 = vadd.f32 %v231, %v271
        %v275 = vld [vmem:[%s185 + $0x2] sm:$0xff]
        %v276 = vld [vmem:[%s185 + $0xa] sm:$0xff]
        %s277 = scalar_lea.vmem [#allocation2], 144
        %v278 = vld [vmem:[%s277] sm:$0xff]
        %v279 = vld [vmem:[%s277 + $0x8] sm:$0xff]
        %v280 = vld [vmem:[%s277 + $0x10] sm:$0xff]
        %v281 = vld [vmem:[%s277 + $0x18] sm:$0xff]
        %v282 = vld [vmem:[%s277 + $0x20] sm:$0xff]
        %v283 = vld [vmem:[%s277 + $0x28] sm:$0xff]
        %v284 = vld [vmem:[%s277 + $0x30] sm:$0xff]
        %v285 = vld [vmem:[%s277 + $0x38] sm:$0xff]
        %v286 = vld [vmem:[%s277 + $0x40] sm:$0xff]
        %v288 = vsel %vm199, %v275, 0
        %v291 = vsel %vm199, %v276, 0
        %293 = vmatpush.msra.mxu0 0.0
        %294 = vmatpush.msra.mxu0 0.0
        %295 = vmatpush.msra.mxu0 0.0
        %296 = vmatpush.msra.mxu0 0.0
        %297 = vmatpush.msra.mxu0 0.0
        %298 = vmatpush.msra.mxu0 0.0
        %299 = vmatpush.msra.mxu0 0.0
        %300 = vmatpush.msra.mxu0 %v286
        %301 = vmatpush.msra.mxu0 %v285
        %302 = vmatpush.msra.mxu0 %v284
        %303 = vmatpush.msra.mxu0 %v283
        %304 = vmatpush.msra.mxu0 %v282
        %305 = vmatpush.msra.mxu0 %v281
        %306 = vmatpush.msra.mxu0 %v280
        %307 = vmatpush.msra.mxu0 %v279
        %308 = vmatpush.msra.mxu0 %v278
        %309 = vmatmul.f32.gmra.mxu0 %v288
        %v310 = vpop.f32.mrf.mxu0
        %v311 = vadd.f32 0.0, %v310
        %312 = vmatmul.f32.gmra.mxu0 %v291
        %v313 = vpop.f32.mrf.mxu0
        %v314 = vadd.f32 0.0, %v313
        %315 = vdwg.mxu0
        %v316 = vadd.f32 %v273, %v311
        %v317 = vadd.f32 %v274, %v314
        %vm318 = vcmp.gt.f32.partialorder %v316, 0.0
        %vm319 = vcmp.gt.f32.partialorder %v317, 0.0
        %v320 = vperm.slane %v187, 0
        %v321 = vmul.f32 %v320, %v316
        %v322 = vmul.f32 %v320, %v317
        %v323 = vsel %vm318, %v316, %v321
        %v324 = vsel %vm319, %v317, %v322
        %325 = vst [vmem:[%s180] sm:$0xff] %v323
        %326 = vst [vmem:[%s180 + $0x8] sm:$0xff] %v324
        %s327 = sand.u32 %s94, 1
        %s328 = scalar_lea.sflag [#allocation4], %s327
        %s329 = sand.u32 %s94, 1
        %s330 = smul.addr %s329, 16
        %s331 = scalar_lea.vmem [#allocation5], %s330
        // Predicated region
        $region37: #{tpu_custom_call.1} parent=31 // pred_check
          %p332 = pneg %p104
        $region38: #{tpu_custom_call.1} parent=31 // pred_check_branch
          %334 = sbr.rel (%p332) target = $region40
        $region39: #{tpu_custom_call.1} parent=31 // pred_region
          %336 = vsyncadd %s328, 0
          %s337 = smul.addr %s18, 2
          %s338 = smul.addr %s337, 8
          %s339 = scalar_lea.hbm %s3, %s338
          %s340 = sshll.u32 %s331, 4
          %s341 = int_to_ptr.vmem [resolvable:$true] %s340
          %s342 = sshll.u32 %s339, 4
          %s343 = int_to_ptr.hbm [resolvable:$true] %s342
          %348 = dma.vmem_to_hbm [thread:$0]  %s341, 256, %s343, %s328, 128, 128, 8
        $region40: #{tpu_custom_call.1} parent=31 // pred_fallthru
          _
      $region32: #{tpu_custom_call.1} parent=5 // pred_fallthru
        _
      %p349 = scmp.le.s32.totalorder 2, %s13
      // Predicated region
      $region41: #{tpu_custom_call.1} parent=5 // pred_check
        %p350 = pneg %p349
      $region42: #{tpu_custom_call.1} parent=5 // pred_check_branch
        %352 = sbr.rel (%p350) target = $region44
      $region43: #{tpu_custom_call.1} parent=5 // pred_region
        %s353 = ssub.s32 %s13, 2
        // Predicated region
        $region45: #{tpu_custom_call.1} parent=43 // pred_check
          %p354 = pneg %p110
        $region46: #{tpu_custom_call.1} parent=43 // pred_check_branch
          %356 = sbr.rel (%p354) target = $region48
        $region47: #{tpu_custom_call.1} parent=43 // pred_region
          %s357 = sand.u32 %s95, 1
          %s358 = scalar_lea.sflag [#allocation4], %s357
          %s359 = sand.u32 %s95, 1
          %s360 = smul.addr %s359, 16
          %s361 = scalar_lea.vmem [#allocation5], %s360
          %363 = dma.done %s358, 256
        $region48: #{tpu_custom_call.1} parent=43 // pred_fallthru
          _
      $region44: #{tpu_custom_call.1} parent=5 // pred_fallthru
        _
    $region6: #{tpu_custom_call.1} parent=1 // loop_footer
      %s17 = sadd.s32 1, %s13
    $region7: #{tpu_custom_call.1} parent=1 // loop_footer_branch
      %12 = sbr.rel target = $region3
    $region8: #{tpu_custom_call.1} parent=1 // loop_exit
      _
    %364 = vsyncpa [#allocation3], 1
    %s365 = scalar_lea.sflag [#allocation3], 1
    %366 = vsyncpa %s365, 1
    %367 = vsyncpa [#allocation4], 1
    %s368 = scalar_lea.sflag [#allocation4], 1
    %369 = vsyncpa %s368, 1

</llo_original>
